<compile_context>
chip_gen: v7x
topology: tpu7x:2x2x1
jax: 0.10.0
libtpu: 0.0.40
codegen_flags: <defaults>
</compile_context>

<pallas_src>
import jax
import jax.numpy as jnp
from jax.experimental import pallas as pl
from jax.experimental.pallas import tpu as pltpu

LANES = 128           # vreg lane width (fast axis)
SUBLANES = 8          # vreg sublane height
MAX_BLOCK_ROWS = 2048  # 2048 * 128 * 4 B = 1 MiB per f32 buffer


def _mish_kernel(x_ref, o_ref):
    x = x_ref[...].astype(jnp.float32)
    # Numerically stable softplus: log(1 + exp(x)) = max(x, 0) + log1p(exp(-|x|))
    sp = jnp.maximum(x, 0.0) + jnp.log1p(jnp.exp(-jnp.abs(x)))
    o_ref[...] = (x * jnp.tanh(sp)).astype(o_ref.dtype)


def mish(x):
    """Mish activation: x * tanh(softplus(x)). Works for any shape/size/dtype."""
    orig_shape = x.shape
    dtype = x.dtype
    n = x.size

    # Flatten everything (batch, channels, spatial) into rows of 128 lanes.
    rows_needed = pl.cdiv(n, LANES)
    block_rows = min(MAX_BLOCK_ROWS, pl.cdiv(rows_needed, SUBLANES) * SUBLANES)
    total_rows = pl.cdiv(rows_needed, block_rows) * block_rows
    padded = total_rows * LANES

    xf = jnp.ravel(x)
    if padded != n:
        xf = jnp.pad(xf, (0, padded - n))
    x2 = xf.reshape(total_rows, LANES)

    out = pl.pallas_call(
        _mish_kernel,
        grid=(total_rows // block_rows,),
        in_specs=[pl.BlockSpec((block_rows, LANES), lambda i: (i, 0))],
        out_specs=pl.BlockSpec((block_rows, LANES), lambda i: (i, 0)),
        out_shape=jax.ShapeDtypeStruct((total_rows, LANES), dtype),
        compiler_params=pltpu.CompilerParams(
            dimension_semantics=("parallel",)),
    )(x2)

    return out.reshape(-1)[:n].reshape(orig_shape)


def _mish_reference(x):
    # Pure-JAX reference for correctness check.
    return x * jnp.tanh(jax.nn.softplus(x))


if __name__ == "__main__":
    key = jax.random.PRNGKey(0)
    # Small shape consistent with a conv-activation use-site: (B, C, H, W).
    x = jax.random.normal(key, (2, 4, 16, 16), jnp.float32) * 3.0

    fwd = jax.jit(mish)
    y = jax.block_until_ready(fwd(x))

    assert y.shape == x.shape, y.shape
    assert y.dtype == x.dtype, y.dtype
    assert bool(jnp.all(jnp.isfinite(y)))
    y_ref = _mish_reference(x)
    assert bool(jnp.allclose(y, y_ref, atol=1e-5, rtol=1e-5)), (
        float(jnp.max(jnp.abs(y - y_ref))))
    print("KERNEL_OK")
</pallas_src>

<mosaic_0001>
module attributes {stable_mosaic.version = 11 : i64} {
  func.func @_mish_kernel(%arg0: i32, %arg1: memref<16x128xf32, #tpu.memory_space<vmem>>, %arg2: memref<16x128xf32, #tpu.memory_space<vmem>>) attributes {dimension_semantics = [#tpu.dimension_semantics<parallel>], iteration_bounds = array<i64: 1>, scalar_prefetch = 0 : i64, scratch_operands = 0 : i64, tpu.core_type = #tpu.core_type<tc>, window_params = [{transform_indices = @transform_0, window_bounds = array<i64: 16, 128>}, {transform_indices = @transform_1, window_bounds = array<i64: 16, 128>}]} {
    %c0 = arith.constant 0 : index
    %c0_0 = arith.constant 0 : index
    %0 = vector.load %arg1[%c0, %c0_0] : memref<16x128xf32, #tpu.memory_space<vmem>>, vector<16x128xf32>
    %cst = arith.constant 0.000000e+00 : f32
    %1 = vector.broadcast %cst : f32 to vector<16x128xf32>
    %2 = arith.maximumf %0, %1 : vector<16x128xf32>
    %3 = math.absf %0 : vector<16x128xf32>
    %cst_1 = arith.constant 0.000000e+00 : f32
    %4 = vector.broadcast %cst_1 : f32 to vector<16x128xf32>
    %5 = arith.subf %4, %3 : vector<16x128xf32>
    %6 = math.exp %5 : vector<16x128xf32>
    %7 = math.log1p %6 : vector<16x128xf32>
    %8 = arith.addf %2, %7 : vector<16x128xf32>
    %9 = math.tanh %8 : vector<16x128xf32>
    %10 = arith.mulf %0, %9 : vector<16x128xf32>
    %c0_2 = arith.constant 0 : index
    %c0_3 = arith.constant 0 : index
    %11 = vector.load %arg2[%c0_2, %c0_3] : memref<16x128xf32, #tpu.memory_space<vmem>>, vector<16x128xf32>
    tpu.vector_store %arg2[%c0_2, %c0_3], %10 {strides = array<i32>} : memref<16x128xf32, #tpu.memory_space<vmem>>, vector<16x128xf32>,
    return
  }
  func.func @transform_0(%arg0: i32) -> (i32, i32) {
    %c0_i32 = arith.constant 0 : i32
    %c0_i32_0 = arith.constant 0 : i32
    return %arg0, %c0_i32 : i32, i32
  }
  func.func @transform_1(%arg0: i32) -> (i32, i32) {
    %c0_i32 = arith.constant 0 : i32
    %c0_i32_0 = arith.constant 0 : i32
    return %arg0, %c0_i32 : i32, i32
  }
}

</mosaic_0001>

<llo_original>
// kernel: mish.1
$region0: #{mish.1}
  #allocation0 [shape = 'u32[]', space=smem, size = 0x4, offset = 0x4, fixed_abs, tag = 'smem constant byte address 0x4 - core index']
  #allocation1 [shape = 'u32[144,128]{1,0:T(1,128)}', space=vmem, size = 0x12000, scoped, tag = 'internal scratch']
  %s0 = inlined_call_operand.vmem [shape: f32[16,128], index: 0, kind: input, shape index: {}]
  %s1 = inlined_call_operand.vmem [shape: f32[16,128], index: 1, kind: output, shape index: {}]
  %s2 = sld [smem:[#allocation0]]
  $region14: #{mish.1} parent=0
    _
  %s4 = ssub.s32 1, %s2
  %s5 = scalar_select 0, %s4, %s2
  // Predicated region
  $region2: #{mish.1} parent=0 // pred_check
    _
  $region3: #{mish.1} parent=0 // pred_check_branch
    %7 = sbr.rel (0) target = $region5
  $region4: #{mish.1} parent=0 // pred_region
    _
  $region5: #{mish.1} parent=0 // pred_fallthru
    _
  %v8 = vld [vmem:[%s0] sm:$0xff]
  %v9 = vld [vmem:[%s0 + $0x8] sm:$0xff]
  %v10 = vmax.f32 %v8, 0.0
  %v11 = vmax.f32 %v9, 0.0
  %v12 = vand.u32 2147483647, %v8
  %v13 = vand.u32 2147483647, %v9
  %v14 = vsub.f32 0.0, %v12
  %v15 = vsub.f32 0.0, %v13
  %v16 = vmul.f32 %v14, 1.442695
  %v17 = vpow.pop %v16
  %v18 = vmul.f32 %v15, 1.442695
  %v19 = vpow.pop %v18
  %v20 = vadd.f32 %v17, 1.0
  %v21 = vlog2.pop %v20
  %v22 = vmul.f32 %v21, 0.6931472
  %v23 = vmul.f32 -0.5, %v17
  %v24 = vadd.f32 %v23, 1.0
  %v25 = vmul.f32 %v24, %v17
  %v26 = vand.u32 2147483647, %v17
  %vm27 = vcmp.lt.f32.partialorder %v26, 0.0004427343
  %v28 = vsel %vm27, %v25, %v22
  %v29 = vadd.f32 %v19, 1.0
  %v30 = vlog2.pop %v29
  %v31 = vmul.f32 %v30, 0.6931472
  %v32 = vmul.f32 -0.5, %v19
  %v33 = vadd.f32 %v32, 1.0
  %v34 = vmul.f32 %v33, %v19
  %v35 = vand.u32 2147483647, %v19
  %vm36 = vcmp.lt.f32.partialorder %v35, 0.0004427343
  %v37 = vsel %vm36, %v34, %v31
  %v38 = vadd.f32 %v10, %v28
  %v39 = vadd.f32 %v11, %v37
  %v40 = vtanh.pop %v38
  %v41 = vtanh.pop %v39
  %v42 = vmul.f32 %v8, %v40
  %v43 = vmul.f32 %v9, %v41
  %44 = vst [vmem:[%s1] sm:$0xff] %v42
  %45 = vst [vmem:[%s1 + $0x8] sm:$0xff] %v43
  // Predicated region
  $region6: #{mish.1} parent=0 // pred_check
    _
  $region7: #{mish.1} parent=0 // pred_check_branch
    %47 = sbr.rel (0) target = $region9
  $region8: #{mish.1} parent=0 // pred_region
    _
  $region9: #{mish.1} parent=0 // pred_fallthru
    _
  // Predicated region
  $region10: #{mish.1} parent=0 // pred_check
    _
  $region11: #{mish.1} parent=0 // pred_check_branch
    %49 = sbr.rel (0) target = $region13
  $region12: #{mish.1} parent=0 // pred_region
    _
  $region13: #{mish.1} parent=0 // pred_fallthru
    _

</llo_original>
